<compile_context>
chip_gen: v5e
topology: v5e:2x2
jax: 0.10.0
libtpu: 0.0.40
codegen_flags: <defaults>
</compile_context>

<pallas_src>
import functools

import jax
import jax.numpy as jnp
from jax.experimental import pallas as pl
from jax.experimental.pallas import tpu as pltpu


_MIN_GRID_STEPS = 4  # >= 2 steps per TensorCore on v7x's two-core megacore


def _layernorm_kernel(z_ref, o_ref, *, eps, n):
    """Standard path: hidden dim == lane dim, fully resident per block."""
    z = z_ref[...].astype(jnp.float32)
    mean = jnp.sum(z, axis=-1, keepdims=True) * (1.0 / n)
    d = z - mean
    var = jnp.sum(d * d, axis=-1, keepdims=True) * (1.0 / (n - 1))
    scale = jax.lax.rsqrt(var + eps)  # EUP
    o_ref[...] = (d * scale).astype(o_ref.dtype)


def _layernorm_packed_kernel(z_ref, seg_ref, o_ref, *, eps, n):
    """Lane-dense path for H < 128.

    g = 128 // H original rows are packed into each 128-lane row.  Segment
    sums (per original row) are computed with a small MXU matmul against a
    block-diagonal ones matrix, keeping all data in (tile_rows, 128) layout
    with unmasked full-lane loads/stores.
    """
    z = z_ref[...].astype(jnp.float32)
    seg = seg_ref[...]  # (128, 128) block-diagonal ones, f32
    mean = jnp.dot(z, seg, preferred_element_type=jnp.float32) * (1.0 / n)
    d = z - mean
    var = jnp.dot(d * d, seg, preferred_element_type=jnp.float32) * (1.0 / (n - 1))
    scale = jax.lax.rsqrt(var + eps)
    o_ref[...] = (d * scale).astype(o_ref.dtype)


def _tpu_vmem_capacity_bytes():
    try:
        return int(pltpu.get_tpu_info().vmem_capacity_bytes)
    except Exception:
        return 64 * 1024 * 1024  # conservative fallback (v7x per-TC VMEM)


def _budgets():
    vmem_phys = _tpu_vmem_capacity_bytes()
    if vmem_phys <= 64 * 1024 * 1024:
        # v7x: 64 MiB per TC -> modest tiles, leave Mosaic-scratch headroom.
        return 4 << 20, 44 << 20
    # v5e / v6e: 128 MiB physical VMEM -> larger tiles, fewer grid steps.
    return 8 << 20, 100 << 20


def _block_vmem_bytes(tile_rows, width, dtype_bytes):
    # 2x in + 2x out double buffers + ~4 full-tile f32 temporaries.
    blk = tile_rows * width
    return 4 * blk * dtype_bytes + 4 * blk * 4


def _pick_tile_rows(rows, width, dtype_bytes, row_mult, target_bytes, vmem_cap):
    if rows <= row_mult:
        return rows  # full-extent block (allowed: equals the full array dim)
    tile = max(target_bytes // (width * dtype_bytes), row_mult)
    tile = (tile // row_mult) * row_mult
    # Keep >= _MIN_GRID_STEPS grid steps when possible: double-buffered
    # pipelining per core plus megacore sharding on v7x.
    cap = pl.cdiv(pl.cdiv(rows, _MIN_GRID_STEPS), row_mult) * row_mult
    tile = max(min(tile, cap), row_mult)
    # VMEM guard (with 25% headroom) against the per-generation budget.
    per_row = width * (4 * dtype_bytes + 4 * 4)
    budget_rows = int(vmem_cap / (1.25 * per_row))
    budget_rows = max((budget_rows // row_mult) * row_mult, row_mult)
    # TODO(synk): if even `row_mult` rows blow the budget (H in the 100Ks),
    # fall back to a chunked-H kernel accumulating stats in VMEM scratch.
    return min(tile, budget_rows)


def layer_norm(z, eps=1e-5):
    """(Z - mean(Z,-1)) / sqrt(var(Z,-1, unbiased=True) + eps) over last axis."""
    orig_shape = z.shape
    h = int(orig_shape[-1])
    rows = 1
    for s in orig_shape[:-1]:
        rows *= int(s)

    dtype_bytes = jnp.dtype(z.dtype).itemsize
    row_mult = 8 if dtype_bytes >= 4 else (16 if dtype_bytes == 2 else 32)
    target_bytes, vmem_cap = _budgets()

    group = 128 // h if (1 < h < 128 and 128 % h == 0) else 1
    lane_dense = group > 1 and rows % group == 0

    if lane_dense:
        rows_p, width = rows // group, 128
        z2 = z.reshape(rows_p, width)
        lane_seg = jnp.arange(width, dtype=jnp.int32) // h
        seg = (lane_seg[:, None] == lane_seg[None, :]).astype(jnp.float32)
    else:
        rows_p, width = rows, h
        z2 = z.reshape(rows_p, width)

    tile_rows = _pick_tile_rows(rows_p, width, dtype_bytes, row_mult,
                                target_bytes, vmem_cap)
    grid = (pl.cdiv(rows_p, tile_rows),)

    needed = _block_vmem_bytes(tile_rows, width, dtype_bytes)
    if lane_dense:
        needed += 2 * width * width * 4  # double-buffered segment matrix
    vmem_limit = int(min(vmem_cap, max(needed * 1.25, 32 << 20)))

    compiler_params = pltpu.CompilerParams(
        dimension_semantics=("parallel",),
        vmem_limit_bytes=vmem_limit,
    )
    out_shape = jax.ShapeDtypeStruct((rows_p, width), z2.dtype)
    row_spec = pl.BlockSpec((tile_rows, width), lambda i: (i, 0))

    if lane_dense:
        kernel = functools.partial(_layernorm_packed_kernel,
                                   eps=float(eps), n=int(h))
        out = pl.pallas_call(
            kernel,
            out_shape=out_shape,
            grid_spec=pltpu.PrefetchScalarGridSpec(
                num_scalar_prefetch=0,
                grid=grid,
                in_specs=[row_spec,
                          pl.BlockSpec((width, width), lambda i: (0, 0))],
                out_specs=row_spec,
            ),
            compiler_params=compiler_params,
        )(z2, seg)
    else:
        kernel = functools.partial(_layernorm_kernel,
                                   eps=float(eps), n=int(h))
        out = pl.pallas_call(
            kernel,
            out_shape=out_shape,
            grid_spec=pltpu.PrefetchScalarGridSpec(
                num_scalar_prefetch=0,
                grid=grid,
                in_specs=[row_spec],
                out_specs=row_spec,
            ),
            compiler_params=compiler_params,
        )(z2)

    return out.reshape(orig_shape)


def _reference(z, eps=1e-5):
    mean = jnp.mean(z, axis=-1, keepdims=True)
    var = jnp.var(z, axis=-1, keepdims=True, ddof=1)  # unbiased, matches torch.var
    return (z - mean) / jnp.sqrt(var + eps)


if __name__ == "__main__":
    key = jax.random.PRNGKey(0)

    # Primary demo shape: batch=2, seq=8, hidden=32 (lane-dense packed path).
    Z = jax.random.normal(key, (2, 8, 32), dtype=jnp.float32)
    out = jax.block_until_ready(layer_norm(Z, eps=1e-5))
    assert out.shape == Z.shape
    assert jnp.allclose(out, _reference(Z), atol=1e-5, rtol=1e-5)

    # Lane-dense path with multiple grid steps.
    k1, k2, k3 = jax.random.split(key, 3)
    Z1 = jax.random.normal(k1, (8, 16, 32), dtype=jnp.float32)
    o1 = jax.block_until_ready(layer_norm(Z1))
    assert jnp.allclose(o1, _reference(Z1), atol=1e-5, rtol=1e-5)

    # Standard path (H >= 128).
    Z2 = jax.random.normal(k2, (2, 8, 256), dtype=jnp.float32)
    o2 = jax.block_until_ready(layer_norm(Z2))
    assert jnp.allclose(o2, _reference(Z2), atol=1e-5, rtol=1e-5)

    # Fallback path (H not a divisor of 128, odd row count -> masked last block).
    Z3 = jax.random.normal(k3, (3, 5, 48), dtype=jnp.float32)
    o3 = jax.block_until_ready(layer_norm(Z3))
    assert jnp.allclose(o3, _reference(Z3), atol=1e-5, rtol=1e-5)

    print("KERNEL_OK")
</pallas_src>

<mosaic_0001>
module attributes {stable_mosaic.version = 11 : i64} {
  func.func @_layernorm_packed_kernel(%arg0: i32, %arg1: memref<4x128xf32, #tpu.memory_space<vmem>>, %arg2: memref<128x128xf32, #tpu.memory_space<vmem>>, %arg3: memref<4x128xf32, #tpu.memory_space<vmem>>) attributes {dimension_semantics = [#tpu.dimension_semantics<parallel>], iteration_bounds = array<i64: 1>, scalar_prefetch = 0 : i64, scratch_operands = 0 : i64, tpu.core_type = #tpu.core_type<tc>, window_params = [{transform_indices = @transform_0, window_bounds = array<i64: 4, 128>}, {pipeline_mode = #tpu.pipeline_mode<synchronous>, transform_indices = @transform_1, window_bounds = array<i64: 128, 128>}, {transform_indices = @transform_2, window_bounds = array<i64: 4, 128>}]} {
    %c0 = arith.constant 0 : index
    %c0_0 = arith.constant 0 : index
    %0 = vector.load %arg1[%c0, %c0_0] : memref<4x128xf32, #tpu.memory_space<vmem>>, vector<4x128xf32>
    %c0_1 = arith.constant 0 : index
    %c0_2 = arith.constant 0 : index
    %1 = vector.load %arg2[%c0_1, %c0_2] : memref<128x128xf32, #tpu.memory_space<vmem>>, vector<128x128xf32>
    %cst = arith.constant dense<0.000000e+00> : vector<4x128xf32>
    %2 = tpu.matmul %0, %1, %cst {dimension_numbers = #tpu.dot_dimension_numbers<[1], [0], [0], [1], [0, 0, 1, 1], [], []>} : vector<4x128xf32>, vector<128x128xf32>, vector<4x128xf32> -> vector<4x128xf32>
    %cst_3 = arith.constant 3.125000e-02 : f32
    %3 = vector.broadcast %cst_3 : f32 to vector<4x128xf32>
    %4 = arith.mulf %2, %3 : vector<4x128xf32>
    %5 = arith.subf %0, %4 : vector<4x128xf32>
    %6 = arith.mulf %5, %5 : vector<4x128xf32>
    %cst_4 = arith.constant dense<0.000000e+00> : vector<4x128xf32>
    %7 = tpu.matmul %6, %1, %cst_4 {dimension_numbers = #tpu.dot_dimension_numbers<[1], [0], [0], [1], [0, 0, 1, 1], [], []>} : vector<4x128xf32>, vector<128x128xf32>, vector<4x128xf32> -> vector<4x128xf32>
    %cst_5 = arith.constant 0.0322580636 : f32
    %8 = vector.broadcast %cst_5 : f32 to vector<4x128xf32>
    %9 = arith.mulf %7, %8 : vector<4x128xf32>
    %cst_6 = arith.constant 9.99999974E-6 : f32
    %10 = vector.broadcast %cst_6 : f32 to vector<4x128xf32>
    %11 = arith.addf %9, %10 : vector<4x128xf32>
    %12 = math.rsqrt %11 : vector<4x128xf32>
    %13 = arith.mulf %5, %12 : vector<4x128xf32>
    %c0_7 = arith.constant 0 : index
    %c0_8 = arith.constant 0 : index
    %14 = vector.load %arg3[%c0_7, %c0_8] : memref<4x128xf32, #tpu.memory_space<vmem>>, vector<4x128xf32>
    tpu.vector_store %arg3[%c0_7, %c0_8], %13 {strides = array<i32>} : memref<4x128xf32, #tpu.memory_space<vmem>>, vector<4x128xf32>,
    return
  }
  func.func @transform_0(%arg0: i32) -> (i32, i32) {
    %c0_i32 = arith.constant 0 : i32
    %c0_i32_0 = arith.constant 0 : i32
    return %arg0, %c0_i32 : i32, i32
  }
  func.func @transform_1(%arg0: i32) -> (i32, i32) {
    %c0_i32 = arith.constant 0 : i32
    %c0_i32_0 = arith.constant 0 : i32
    %c0_i32_1 = arith.constant 0 : i32
    return %c0_i32, %c0_i32_0 : i32, i32
  }
  func.func @transform_2(%arg0: i32) -> (i32, i32) {
    %c0_i32 = arith.constant 0 : i32
    %c0_i32_0 = arith.constant 0 : i32
    return %arg0, %c0_i32 : i32, i32
  }
}

</mosaic_0001>

<llo_original>
// kernel: tpu_custom_call.1
$region0: #{tpu_custom_call.1}
  #allocation0 [shape = 'u32[]', space=smem, size = 0x4, offset = 0x4, fixed_abs, tag = 'smem constant byte address 0x4 - core index']
  #allocation1 [shape = 'u32[72,128]{1,0:T(1,128)}', space=vmem, size = 0x9000, scoped, tag = 'internal scratch']
  %s0 = inlined_call_operand.hbm [shape: f32[4,128], index: 0, kind: input, shape index: {}]
  %s1 = inlined_call_operand.hbm [shape: f32[128,128], index: 1, kind: input, shape index: {}]
  %s2 = inlined_call_operand.hbm [shape: f32[4,128], index: 2, kind: output, shape index: {}]
  %s3 = sld [smem:[#allocation0]]
  $region26: #{tpu_custom_call.1} parent=0
    _
  %s5 = ssub.s32 1, %s3
  %s6 = scalar_select 0, %s5, %s3
  $region1: #{tpu_custom_call.1} parent=0
    #allocation2 [shape = 'u8[2048]{0}', space=vmem, size = 0x800, scoped, tag = 'input window, operand 0, single buffered']
    #allocation3 [shape = 's32[1]{0}', space=sflag, size = 0x4, scoped, tag = 'scoped memory for tpu_custom_call.1']
    #allocation4 [shape = 's32[1]{0}', space=sflag, size = 0x4, scoped, tag = 'scoped memory for tpu_custom_call.1']
    #allocation5 [shape = 'u8[65536]{0}', space=vmem, size = 0x10000, scoped, tag = 'input window, operand 1, single buffered']
    #allocation6 [shape = 's32[1]{0}', space=sflag, size = 0x4, scoped, tag = 'scoped memory for tpu_custom_call.1']
    #allocation7 [shape = 'u8[2048]{0}', space=vmem, size = 0x800, scoped, tag = 'output window, operand 0, single buffered']
    %7 = vsyncpa [#allocation3], 0
    %8 = vsyncpa [#allocation6], 0
    %9 = vsyncpa [#allocation4], 0
    // Predicated region
    $region2: #{tpu_custom_call.1} parent=1 // pred_check
      _
    $region3: #{tpu_custom_call.1} parent=1 // pred_check_branch
      %11 = sbr.rel (0) target = $region5
    $region4: #{tpu_custom_call.1} parent=1 // pred_region
      %13 = vsyncadd [#allocation3], 0
      %s15 = sshll.u32 %s0, 4
      %s16 = int_to_ptr.hbm [resolvable:$true] %s15
      %s17 = sshll.u32 [#allocation2], 4
      %s18 = int_to_ptr.vmem [resolvable:$true] %s17
      %20 = dma.hbm_to_vmem [thread:$0]  %s16, 64, %s18, [#allocation3]
    $region5: #{tpu_custom_call.1} parent=1 // pred_fallthru
      _
    // Predicated region
    $region6: #{tpu_custom_call.1} parent=1 // pred_check
      _
    $region7: #{tpu_custom_call.1} parent=1 // pred_check_branch
      %22 = sbr.rel (0) target = $region9
    $region8: #{tpu_custom_call.1} parent=1 // pred_region
      %24 = vsyncadd [#allocation6], 0
      %s25 = sshll.u32 %s1, 4
      %s26 = int_to_ptr.hbm [resolvable:$true] %s25
      %s27 = sshll.u32 [#allocation5], 4
      %s28 = int_to_ptr.vmem [resolvable:$true] %s27
      %33 = dma.hbm_to_vmem [thread:$0]  %s26, 2048, %s28, [#allocation6], 128, 128, 8
    $region9: #{tpu_custom_call.1} parent=1 // pred_fallthru
      _
    // Predicated region
    $region10: #{tpu_custom_call.1} parent=1 // pred_check
      _
    $region11: #{tpu_custom_call.1} parent=1 // pred_check_branch
      %35 = sbr.rel (0) target = $region13
    $region12: #{tpu_custom_call.1} parent=1 // pred_region
      %37 = dma.done [#allocation3], 64
    $region13: #{tpu_custom_call.1} parent=1 // pred_fallthru
      _
    // Predicated region
    $region14: #{tpu_custom_call.1} parent=1 // pred_check
      _
    $region15: #{tpu_custom_call.1} parent=1 // pred_check_branch
      %39 = sbr.rel (0) target = $region17
    $region16: #{tpu_custom_call.1} parent=1 // pred_region
      %41 = dma.done [#allocation6], 2048
    $region17: #{tpu_custom_call.1} parent=1 // pred_fallthru
      _
    %v42 = vld [vmem:[#allocation2] sm:$0xf]
    %v43 = vld [vmem:[#allocation5] sm:$0xff]
    %v44 = vld [vmem:[#allocation5 + $0x8] sm:$0xff]
    %v45 = vld [vmem:[#allocation5 + $0x10] sm:$0xff]
    %v46 = vld [vmem:[#allocation5 + $0x18] sm:$0xff]
    %v47 = vld [vmem:[#allocation5 + $0x20] sm:$0xff]
    %v48 = vld [vmem:[#allocation5 + $0x28] sm:$0xff]
    %v49 = vld [vmem:[#allocation5 + $0x30] sm:$0xff]
    %v50 = vld [vmem:[#allocation5 + $0x38] sm:$0xff]
    %v51 = vld [vmem:[#allocation5 + $0x40] sm:$0xff]
    %v52 = vld [vmem:[#allocation5 + $0x48] sm:$0xff]
    %v53 = vld [vmem:[#allocation5 + $0x50] sm:$0xff]
    %v54 = vld [vmem:[#allocation5 + $0x58] sm:$0xff]
    %v55 = vld [vmem:[#allocation5 + $0x60] sm:$0xff]
    %v56 = vld [vmem:[#allocation5 + $0x68] sm:$0xff]
    %v57 = vld [vmem:[#allocation5 + $0x70] sm:$0xff]
    %v58 = vld [vmem:[#allocation5 + $0x78] sm:$0xff]
    %59 = vmatpush.msra.mxu0 %v58
    %60 = vmatpush.msra.mxu0 %v57
    %61 = vmatpush.msra.mxu0 %v56
    %62 = vmatpush.msra.mxu0 %v55
    %63 = vmatpush.msra.mxu0 %v54
    %64 = vmatpush.msra.mxu0 %v53
    %65 = vmatpush.msra.mxu0 %v52
    %66 = vmatpush.msra.mxu0 %v51
    %67 = vmatpush.msra.mxu0 %v50
    %68 = vmatpush.msra.mxu0 %v49
    %69 = vmatpush.msra.mxu0 %v48
    %70 = vmatpush.msra.mxu0 %v47
    %71 = vmatpush.msra.mxu0 %v46
    %72 = vmatpush.msra.mxu0 %v45
    %73 = vmatpush.msra.mxu0 %v44
    %74 = vmatpush.msra.mxu0 %v43
    %75 = vmatmul.f32.gmra.mxu0 %v42
    %v76 = vpop.f32.mrf.mxu0
    %v77 = vadd.f32 0.0, %v76
    %78 = vdwg.mxu0
    %v79 = vmul.f32 %v77, 0.03125
    %v80 = vsub.f32 %v42, %v79
    %v81 = vmul.f32 %v80, %v80
    %82 = vmatpush.msra.mxu0 %v58
    %83 = vmatpush.msra.mxu0 %v57
    %84 = vmatpush.msra.mxu0 %v56
    %85 = vmatpush.msra.mxu0 %v55
    %86 = vmatpush.msra.mxu0 %v54
    %87 = vmatpush.msra.mxu0 %v53
    %88 = vmatpush.msra.mxu0 %v52
    %89 = vmatpush.msra.mxu0 %v51
    %90 = vmatpush.msra.mxu0 %v50
    %91 = vmatpush.msra.mxu0 %v49
    %92 = vmatpush.msra.mxu0 %v48
    %93 = vmatpush.msra.mxu0 %v47
    %94 = vmatpush.msra.mxu0 %v46
    %95 = vmatpush.msra.mxu0 %v45
    %96 = vmatpush.msra.mxu0 %v44
    %97 = vmatpush.msra.mxu0 %v43
    %98 = vmatmul.f32.gmra.mxu0 %v81
    %v99 = vpop.f32.mrf.mxu0
    %v100 = vadd.f32 0.0, %v99
    %101 = vdwg.mxu0
    %v102 = vmul.f32 %v100, 0.032258064
    %v103 = vadd.f32 %v102, 1e-05
    %v104 = vrsqrt.pop %v103
    %v105 = vmul.f32 %v104, %v103
    %v106 = vmul.f32 %v105, %v104
    %v107 = vmul.f32 0.5, %v106
    %v108 = vsub.f32 1.5, %v107
    %v109 = vmul.f32 %v104, %v108
    %vm110 = vweird.f32 %v103
    %vm111 = vweird.f32 %v104
    %vm112 = vmor %vm110, %vm111
    %v113 = vsel %vm112, %v104, %v109
    %v114 = vmul.f32 %v80, %v113
    %115 = vst [vmem:[#allocation7] sm:$0xf] %v114
    // Predicated region
    $region18: #{tpu_custom_call.1} parent=1 // pred_check
      _
    $region19: #{tpu_custom_call.1} parent=1 // pred_check_branch
      %117 = sbr.rel (0) target = $region21
    $region20: #{tpu_custom_call.1} parent=1 // pred_region
      %119 = vsyncadd [#allocation4], 0
      %s121 = sshll.u32 [#allocation7], 4
      %s122 = int_to_ptr.vmem [resolvable:$true] %s121
      %s123 = sshll.u32 %s2, 4
      %s124 = int_to_ptr.hbm [resolvable:$true] %s123
      %126 = dma.vmem_to_hbm [thread:$0]  %s122, 64, %s124, [#allocation4]
    $region21: #{tpu_custom_call.1} parent=1 // pred_fallthru
      _
    // Predicated region
    $region22: #{tpu_custom_call.1} parent=1 // pred_check
      _
    $region23: #{tpu_custom_call.1} parent=1 // pred_check_branch
      %128 = sbr.rel (0) target = $region25
    $region24: #{tpu_custom_call.1} parent=1 // pred_region
      %130 = dma.done [#allocation4], 64
    $region25: #{tpu_custom_call.1} parent=1 // pred_fallthru
      _
    %131 = vsyncpa [#allocation3], 1
    %132 = vsyncpa [#allocation6], 1
    %133 = vsyncpa [#allocation4], 1

</llo_original>
